<compile_context>
chip_gen: v6e
topology: v6e:2x2x1
jax: 0.10.0
libtpu: 0.0.40
codegen_flags: <defaults>
</compile_context>

<pallas_src>
import jax
import jax.numpy as jnp
from jax.experimental import pallas as pl
from jax.experimental.pallas import tpu as pltpu


# ----------------------------- Pallas kernel ------------------------------ #

def _cross_stitch_kernel(p_ref, x_ref, o_ref):
    """One grid step = one (batch element, spatial tile); ALL T task outputs.

    p_ref : (T, T, C)        -- full cross-stitch matrix, resident in VMEM
    x_ref : (T, tile_hw, C)  -- all task features for this (n, spatial tile)
    o_ref : (T, tile_hw, C)  -- all task outputs for this (n, spatial tile)
    """
    T = x_ref.shape[0]
    p = p_ref[...].astype(jnp.float32)            # tiny (T, T, C)
    for i in range(T):                            # static unroll, T is small
        # out[i] = sum_j p[i, j, :] * x[j]  -- plain VPU FMA chain, f32 acc.
        acc = x_ref[0].astype(jnp.float32) * p[i, 0][None, :]
        for j in range(1, T):
            acc = acc + x_ref[j].astype(jnp.float32) * p[i, j][None, :]
        o_ref[i] = acc.astype(o_ref.dtype)


def _pick_hw_tile(hw, num_tasks, channels, itemsize,
                  budget_bytes=4 * 1024 * 1024):
    """Largest spatial tile (multiple of 8, divisor of hw) whose (T, tile, C)
    block stays under `budget_bytes`; double-buffered in+out = 4x that, which
    fits comfortably inside a 32 MiB scoped VMEM limit on v5e/v6e/v7x."""
    bytes_per_row = max(1, num_tasks * channels * itemsize)
    max_tile = max(8, budget_bytes // bytes_per_row)
    if hw <= max_tile or hw % 8 != 0:
        return hw                                  # full-dim escape
    best = 8
    t = 8
    while t <= max_tile:
        if hw % t == 0:
            best = t
        t += 8
    return best


# Below this element count XLA's fused einsum beats any pallas_call (launch +
# per-step pipeline overhead dominate).
_MIN_PALLAS_ELEMS = 1 << 16


def cross_stitch_unit_pallas(params, x):
    """Apply one CrossStitchUnit on lane-friendly stacked features.

    params : (T, T, C)      -- params[i, j, c] (alpha on diag, beta off-diag)
    x      : (T, N, HW, C)  -- channels on the lane axis
    returns: (T, N, HW, C), out[i] = sum_j params[i, j, :] * x[j]
    """
    T, N, HW, C = x.shape

    if x.size < _MIN_PALLAS_ELEMS:
        # Toy sizes: skip the kernel, let XLA fuse it.
        return jnp.einsum('ijc,jnsc->insc', params, x)

    tile_hw = _pick_hw_tile(HW, T, C, jnp.dtype(x.dtype).itemsize)
    grid = (N, HW // tile_hw)

    return pl.pallas_call(
        _cross_stitch_kernel,
        out_shape=jax.ShapeDtypeStruct((T, N, HW, C), x.dtype),
        grid_spec=pltpu.PrefetchScalarGridSpec(
            num_scalar_prefetch=0,
            grid=grid,
            in_specs=[
                # Full cross-stitch matrix, constant index_map -> fetched once.
                pl.BlockSpec((T, T, C), lambda n, s: (0, 0, 0)),
                # All task features for this (batch n, spatial tile s); the
                # batch axis is squeezed out of the kernel view.
                pl.BlockSpec((T, None, tile_hw, C), lambda n, s: (0, n, s, 0)),
            ],
            # All T task outputs written per grid step.
            out_specs=pl.BlockSpec((T, None, tile_hw, C),
                                   lambda n, s: (0, n, s, 0)),
        ),
        compiler_params=pltpu.CompilerParams(
            dimension_semantics=("parallel", "parallel"),
            vmem_limit_bytes=32 * 1024 * 1024),
    )(params, x)


# --------------------------- Module-level glue ----------------------------- #

def init_cross_stitch_params(stages, channels, num_tasks, alpha, beta):
    """Deterministic init: alpha on the diagonal, beta off-diagonal
    (matches CrossStitchUnit.__init__ / ChannelWiseMultiply.init_value)."""
    params = {}
    for stage in stages:
        C = channels[stage]
        eye = jnp.eye(num_tasks, dtype=jnp.float32)
        mat = alpha * eye + beta * (1.0 - eye)            # (T, T)
        params[stage] = jnp.broadcast_to(
            mat[:, :, None], (num_tasks, num_tasks, C)).astype(jnp.float32)
    return params


def _to_kernel_layout(task_features, datasets):
    """dict of (N, C, H, W) -> stacked (T, N, HW, C) with channels on lanes."""
    x = jnp.stack([task_features[d] for d in datasets], axis=0)  # (T,N,C,H,W)
    T, N, C, H, W = x.shape
    x = jnp.transpose(x.reshape(T, N, C, H * W), (0, 1, 3, 2))   # (T,N,HW,C)
    return x, (H, W)


def _from_kernel_layout(x, datasets, hw):
    """stacked (T, N, HW, C) -> dict of (N, C, H, W)."""
    H, W = hw
    T, N, HW, C = x.shape
    x = jnp.transpose(x, (0, 1, 3, 2)).reshape(T, N, C, H, W)
    return {d: x[i] for i, d in enumerate(datasets)}


def cross_stitch_network_forward(task_features, stage_params, datasets,
                                 stages, backbone_size):
    """Synthetic forward over `backbone_size` stages.

    task_features : dict dset -> (N, C, H, W) float32 (all same shape here,
                    matching the post-resize_features path in _foward_train).
    Features are converted once to the stacked lane-friendly layout and kept
    there across stages (no per-stage stack/unstack HBM round-trips).
    At stages listed in `stages` the cross-stitch unit mixes features across
    tasks (the Pallas kernel); other stages are identity (see TODO above).
    """
    x, hw = _to_kernel_layout(task_features, datasets)
    for stage_idx in range(backbone_size):
        s = str(stage_idx)
        # TODO(synk): external backbone body for this stage is identity here.
        if s in stages:
            x = cross_stitch_unit_pallas(stage_params[s], x)
    return _from_kernel_layout(x, datasets, hw)


# --------------------------------- main ------------------------------------ #

if __name__ == "__main__":
    datasets = ["dsetA", "dsetB"]          # tasks
    stages = ["0", "1"]
    alpha, beta = 0.9, 0.1
    backbone_size = 2

    # Small but lane-dense shapes (C on the lane axis must be a multiple of
    # 128 for full unmasked loads/stores; 128 is a realistic backbone width).
    N, C, H, W = 2, 128, 16, 16
    T = len(datasets)
    channels = {"0": C, "1": C}

    key = jax.random.PRNGKey(0)
    k1, k2 = jax.random.split(key)
    task_features = {
        "dsetA": jax.random.normal(k1, (N, C, H, W), dtype=jnp.float32),
        "dsetB": jax.random.normal(k2, (N, C, H, W), dtype=jnp.float32),
    }

    stage_params = init_cross_stitch_params(stages, channels, T, alpha, beta)

    # Make sure the Pallas path (not the tiny-size einsum fallback) is used.
    assert T * N * H * W * C >= _MIN_PALLAS_ELEMS

    out = cross_stitch_network_forward(task_features, stage_params, datasets,
                                       stages, backbone_size)
    out = {k: jax.block_until_ready(v) for k, v in out.items()}

    # Reference check (plain jnp) in the original NCHW layout.
    ref = dict(task_features)
    for s in stages:
        x_stk = jnp.stack([ref[d] for d in datasets], axis=0)     # (T,N,C,H,W)
        mixed = jnp.einsum('ijc,jnchw->inchw', stage_params[s], x_stk)
        ref = {d: mixed[i] for i, d in enumerate(datasets)}
    for d in datasets:
        assert jnp.allclose(out[d], ref[d], atol=1e-5, rtol=1e-5), d

    print("KERNEL_OK")
</pallas_src>

<mosaic_0001>
module attributes {stable_mosaic.version = 11 : i64} {
  func.func @_cross_stitch_kernel(%arg0: i32, %arg1: i32, %arg2: memref<2x2x128xf32, #tpu.memory_space<vmem>>, %arg3: memref<2x1x256x128xf32, #tpu.memory_space<vmem>>, %arg4: memref<2x1x256x128xf32, #tpu.memory_space<vmem>>) attributes {dimension_semantics = [#tpu.dimension_semantics<parallel>, #tpu.dimension_semantics<parallel>], iteration_bounds = array<i64: 2, 1>, scalar_prefetch = 0 : i64, scratch_operands = 0 : i64, tpu.core_type = #tpu.core_type<tc>, window_params = [{pipeline_mode = #tpu.pipeline_mode<synchronous>, transform_indices = @transform_0, window_bounds = array<i64: 2, 2, 128>}, {transform_indices = @transform_1, window_bounds = array<i64: 2, 1, 256, 128>}, {transform_indices = @transform_2, window_bounds = array<i64: 2, 1, 256, 128>}]} {
    %c0 = arith.constant 0 : index
    %c0_0 = arith.constant 0 : index
    %c0_1 = arith.constant 0 : index
    %0 = vector.load %arg2[%c0, %c0_0, %c0_1] : memref<2x2x128xf32, #tpu.memory_space<vmem>>, vector<2x2x128xf32>
    %c0_2 = arith.constant 0 : index
    %c0_3 = arith.constant 0 : index
    %c0_4 = arith.constant 0 : index
    %c0_5 = arith.constant 0 : index
    %1 = vector.load %arg3[%c0_2, %c0_3, %c0_4, %c0_5] : memref<2x1x256x128xf32, #tpu.memory_space<vmem>>, vector<1x1x256x128xf32>
    %2 = vector.shape_cast %1 : vector<1x1x256x128xf32> to vector<256x128xf32>
    %3 = vector.extract_strided_slice %0 {offsets = [0, 0, 0], sizes = [1, 1, 128], strides = [1, 1, 1]} : vector<2x2x128xf32> to vector<1x1x128xf32>
    %4 = vector.shape_cast %3 : vector<1x1x128xf32> to vector<128xf32>
    %5 = vector.shape_cast %4 : vector<128xf32> to vector<1x128xf32>
    %6 = vector.broadcast %5 : vector<1x128xf32> to vector<256x128xf32>
    %7 = arith.mulf %2, %6 : vector<256x128xf32>
    %c1 = arith.constant 1 : index
    %c0_6 = arith.constant 0 : index
    %c0_7 = arith.constant 0 : index
    %c0_8 = arith.constant 0 : index
    %8 = vector.load %arg3[%c1, %c0_6, %c0_7, %c0_8] : memref<2x1x256x128xf32, #tpu.memory_space<vmem>>, vector<1x1x256x128xf32>
    %9 = vector.shape_cast %8 : vector<1x1x256x128xf32> to vector<256x128xf32>
    %10 = vector.extract_strided_slice %0 {offsets = [0, 1, 0], sizes = [1, 1, 128], strides = [1, 1, 1]} : vector<2x2x128xf32> to vector<1x1x128xf32>
    %11 = vector.shape_cast %10 : vector<1x1x128xf32> to vector<128xf32>
    %12 = vector.shape_cast %11 : vector<128xf32> to vector<1x128xf32>
    %13 = vector.broadcast %12 : vector<1x128xf32> to vector<256x128xf32>
    %14 = arith.mulf %9, %13 : vector<256x128xf32>
    %15 = arith.addf %7, %14 : vector<256x128xf32>
    %c0_9 = arith.constant 0 : index
    %c0_10 = arith.constant 0 : index
    %c0_11 = arith.constant 0 : index
    %c0_12 = arith.constant 0 : index
    %16 = vector.load %arg4[%c0_9, %c0_10, %c0_11, %c0_12] : memref<2x1x256x128xf32, #tpu.memory_space<vmem>>, vector<1x1x256x128xf32>
    %17 = vector.shape_cast %16 : vector<1x1x256x128xf32> to vector<256x128xf32>
    %18 = vector.shape_cast %15 : vector<256x128xf32> to vector<1x1x256x128xf32>
    tpu.vector_store %arg4[%c0_9, %c0_10, %c0_11, %c0_12], %18 {strides = array<i32>} : memref<2x1x256x128xf32, #tpu.memory_space<vmem>>, vector<1x1x256x128xf32>,
    %c0_13 = arith.constant 0 : index
    %c0_14 = arith.constant 0 : index
    %c0_15 = arith.constant 0 : index
    %c0_16 = arith.constant 0 : index
    %19 = vector.load %arg3[%c0_13, %c0_14, %c0_15, %c0_16] : memref<2x1x256x128xf32, #tpu.memory_space<vmem>>, vector<1x1x256x128xf32>
    %20 = vector.shape_cast %19 : vector<1x1x256x128xf32> to vector<256x128xf32>
    %21 = vector.extract_strided_slice %0 {offsets = [1, 0, 0], sizes = [1, 1, 128], strides = [1, 1, 1]} : vector<2x2x128xf32> to vector<1x1x128xf32>
    %22 = vector.shape_cast %21 : vector<1x1x128xf32> to vector<128xf32>
    %23 = vector.shape_cast %22 : vector<128xf32> to vector<1x128xf32>
    %24 = vector.broadcast %23 : vector<1x128xf32> to vector<256x128xf32>
    %25 = arith.mulf %20, %24 : vector<256x128xf32>
    %c1_17 = arith.constant 1 : index
    %c0_18 = arith.constant 0 : index
    %c0_19 = arith.constant 0 : index
    %c0_20 = arith.constant 0 : index
    %26 = vector.load %arg3[%c1_17, %c0_18, %c0_19, %c0_20] : memref<2x1x256x128xf32, #tpu.memory_space<vmem>>, vector<1x1x256x128xf32>
    %27 = vector.shape_cast %26 : vector<1x1x256x128xf32> to vector<256x128xf32>
    %28 = vector.extract_strided_slice %0 {offsets = [1, 1, 0], sizes = [1, 1, 128], strides = [1, 1, 1]} : vector<2x2x128xf32> to vector<1x1x128xf32>
    %29 = vector.shape_cast %28 : vector<1x1x128xf32> to vector<128xf32>
    %30 = vector.shape_cast %29 : vector<128xf32> to vector<1x128xf32>
    %31 = vector.broadcast %30 : vector<1x128xf32> to vector<256x128xf32>
    %32 = arith.mulf %27, %31 : vector<256x128xf32>
    %33 = arith.addf %25, %32 : vector<256x128xf32>
    %c1_21 = arith.constant 1 : index
    %c0_22 = arith.constant 0 : index
    %c0_23 = arith.constant 0 : index
    %c0_24 = arith.constant 0 : index
    %34 = vector.load %arg4[%c1_21, %c0_22, %c0_23, %c0_24] : memref<2x1x256x128xf32, #tpu.memory_space<vmem>>, vector<1x1x256x128xf32>
    %35 = vector.shape_cast %34 : vector<1x1x256x128xf32> to vector<256x128xf32>
    %36 = vector.shape_cast %33 : vector<256x128xf32> to vector<1x1x256x128xf32>
    tpu.vector_store %arg4[%c1_21, %c0_22, %c0_23, %c0_24], %36 {strides = array<i32>} : memref<2x1x256x128xf32, #tpu.memory_space<vmem>>, vector<1x1x256x128xf32>,
    return
  }
  func.func @transform_0(%arg0: i32, %arg1: i32) -> (i32, i32, i32) {
    %c0_i32 = arith.constant 0 : i32
    %c0_i32_0 = arith.constant 0 : i32
    %c0_i32_1 = arith.constant 0 : i32
    %c0_i32_2 = arith.constant 0 : i32
    return %c0_i32, %c0_i32_0, %c0_i32_1 : i32, i32, i32
  }
  func.func @transform_1(%arg0: i32, %arg1: i32) -> (i32, i32, i32, i32) {
    %c0_i32 = arith.constant 0 : i32
    %c0_i32_0 = arith.constant 0 : i32
    %c0_i32_1 = arith.constant 0 : i32
    return %c0_i32, %arg0, %arg1, %c0_i32_0 : i32, i32, i32, i32
  }
  func.func @transform_2(%arg0: i32, %arg1: i32) -> (i32, i32, i32, i32) {
    %c0_i32 = arith.constant 0 : i32
    %c0_i32_0 = arith.constant 0 : i32
    %c0_i32_1 = arith.constant 0 : i32
    return %c0_i32, %arg0, %arg1, %c0_i32_0 : i32, i32, i32, i32
  }
}

</mosaic_0001>

<llo_original>
// kernel: tpu_custom_call.1
$region0: #{tpu_custom_call.1}
  #allocation0 [shape = 'u32[]', space=smem, size = 0x4, offset = 0x4, fixed_abs, tag = 'smem constant byte address 0x4 - core index']
  #allocation1 [shape = 'u32[144,128]{1,0:T(1,128)}', space=vmem, size = 0x12000, scoped, tag = 'internal scratch']
  #allocation8 [shape = 's32[]', space=sflag, size = 0x4, offset = 0, fixed_abs, tag = 'sflag constant byte address 0x0 - dummy sync flag']
  #allocation10 [shape = 's32[]', space=sflag, size = 0x4, offset = 0, fixed_abs, tag = 'sflag constant byte address 0x0 - dummy sync flag']
  %s0 = inlined_call_operand.hbm [shape: f32[2,2,128], index: 0, kind: input, shape index: {}]
  %s1 = inlined_call_operand.hbm [shape: f32[2,2,256,128], index: 1, kind: input, shape index: {}]
  %s2 = inlined_call_operand.hbm [shape: f32[2,2,256,128], index: 2, kind: output, shape index: {}]
  %s3 = sld [smem:[#allocation0]]
  $region49: #{tpu_custom_call.1} parent=0
    _
  %s5 = ssub.s32 1, %s3
  %s6 = scalar_select 0, %s5, %s3
  $region1: #{tpu_custom_call.1} parent=0
    #allocation2 [shape = 'u8[2048]{0}', space=vmem, size = 0x800, scoped, tag = 'input window, operand 0, single buffered']
    #allocation3 [shape = 's32[2]{0}', space=sflag, size = 0x8, scoped, tag = 'scoped memory for tpu_custom_call.1']
    #allocation4 [shape = 's32[2]{0}', space=sflag, size = 0x8, scoped, tag = 'scoped memory for tpu_custom_call.1']
    #allocation5 [shape = 'u8[524288]{0}', space=vmem, size = 0x80000, scoped, tag = 'input window, operand 1']
    #allocation6 [shape = 's32[2]{0}', space=sflag, size = 0x8, scoped, tag = 'scoped memory for tpu_custom_call.1']
    #allocation7 [shape = 'u8[524288]{0}', space=vmem, size = 0x80000, scoped, tag = 'output window, operand 0']
    %7 = vsyncpa [#allocation3], 0
    %8 = vsyncpa [#allocation6], 0
    %s9 = scalar_lea.sflag [#allocation6], 1
    %10 = vsyncpa %s9, 0
    %11 = vsyncpa [#allocation4], 0
    %s12 = scalar_lea.sflag [#allocation4], 1
    %13 = vsyncpa %s12, 0
    loop: start=0, step=1, limit=4
    $region2: #{tpu_custom_call.1} parent=1 // loop_pre_header
      _
    $region3: #{tpu_custom_call.1} parent=1 // loop_header
      %s15 = sphi 0, %s19
      %p16 = scmp.ge.s32.totalorder %s15, 4
      %s22 = sphi 0, %s34
      %s23 = sphi 0, %s30
      %s24 = sphi 0, %s22
      %s25 = sphi 0, %s23
      %s26 = sphi 0, %s24
      %s27 = sphi 0, %s25
      %s35 = sphi 0, %s35
      %s37 = sphi 0, %s35
      %s38 = sphi 0, %s37
      %s52 = sphi 0, %s38
      %s60 = sphi 0, %s62
      %s63 = sphi 0, %s60
      %s64 = sphi 0, %s63
      %s80 = sphi 0, %s64
      %s88 = sphi 0, %s90
      %s91 = sphi 0, %s88
      %s92 = sphi 0, %s91
      %s108 = sphi 0, %s92
    $region4: #{tpu_custom_call.1} parent=1 // loop_header_branch
      %18 = sbr.rel (%p16) target = $region8
    $region5: #{tpu_custom_call.1} parent=1 // loop_body
      %s20 = ssub.s32 %s15, 1
      %s21 = ssub.s32 %s15, 2
      %s28 = sadd.s32 1, %s23
      %p29 = scmp.ge.s32.totalorder %s28, 1
      %s30 = scalar_select %p29, 0, %s28
      %s31 = sadd.s32 1, %s22
      %s32 = scalar_select %p29, %s31, %s22
      %p33 = scmp.ge.s32.totalorder %s32, 2
      %s34 = scalar_select %p33, 0, %s32
      %s36 = sadd.s32 %s35, 1
      %p39 = scmp.eq.s32.totalorder %s15, 1
      %p40 = scmp.ne.s32.totalorder %s35, %s37
      %p41 = scmp.eq.s32.totalorder %s15, 0
      %p42 = por %p40, %p41
      %p43 = scmp.ne.s32.totalorder %s35, %s37
      %p44 = scmp.eq.s32.totalorder %s20, 1
      %p45 = por %p43, %p44
      %p46 = scmp.ne.s32.totalorder %s37, %s38
      %p47 = scmp.eq.s32.totalorder %s20, 0
      %p48 = por %p46, %p47
      %p49 = scmp.ne.s32.totalorder %s37, %s38
      %p50 = scmp.eq.s32.totalorder %s21, 1
      %p51 = por %p49, %p50
      %p53 = scmp.ne.s32.totalorder %s38, %s52
      %p54 = scmp.eq.s32.totalorder %s21, 0
      %p55 = por %p53, %p54
      %s56 = ssub.s32 %s22, %s34
      %s57 = ssub.s32 %s23, %s30
      %s58 = sor.u32 %s56, %s57
      %p59 = scmp.eq.s32.totalorder %s58, 0
      %s61 = sadd.s32 %s60, 1
      %s62 = scalar_select %p59, %s60, %s61
      %p65 = pneg %p59
      %p66 = scmp.eq.s32.totalorder %s15, 1
      %p67 = por %p65, %p66
      %p68 = scmp.ne.s32.totalorder %s60, %s63
      %p69 = scmp.eq.s32.totalorder %s15, 0
      %p70 = por %p68, %p69
      %p71 = scmp.ne.s32.totalorder %s60, %s63
      %p72 = scmp.eq.s32.totalorder %s20, 1
      %p73 = por %p71, %p72
      %p74 = scmp.ne.s32.totalorder %s63, %s64
      %p75 = scmp.eq.s32.totalorder %s20, 0
      %p76 = por %p74, %p75
      %p77 = scmp.ne.s32.totalorder %s63, %s64
      %p78 = scmp.eq.s32.totalorder %s21, 1
      %p79 = por %p77, %p78
      %p81 = scmp.ne.s32.totalorder %s64, %s80
      %p82 = scmp.eq.s32.totalorder %s21, 0
      %p83 = por %p81, %p82
      %s84 = ssub.s32 %s22, %s34
      %s85 = ssub.s32 %s23, %s30
      %s86 = sor.u32 %s84, %s85
      %p87 = scmp.eq.s32.totalorder %s86, 0
      %s89 = sadd.s32 %s88, 1
      %s90 = scalar_select %p87, %s88, %s89
      %p93 = pneg %p87
      %p94 = scmp.eq.s32.totalorder %s15, 1
      %p95 = por %p93, %p94
      %p96 = scmp.ne.s32.totalorder %s88, %s91
      %p97 = scmp.eq.s32.totalorder %s15, 0
      %p98 = por %p96, %p97
      %p99 = scmp.ne.s32.totalorder %s88, %s91
      %p100 = scmp.eq.s32.totalorder %s20, 1
      %p101 = por %p99, %p100
      %p102 = scmp.ne.s32.totalorder %s91, %s92
      %p103 = scmp.eq.s32.totalorder %s20, 0
      %p104 = por %p102, %p103
      %p105 = scmp.ne.s32.totalorder %s91, %s92
      %p106 = scmp.eq.s32.totalorder %s21, 1
      %p107 = por %p105, %p106
      %p109 = scmp.ne.s32.totalorder %s92, %s108
      %p110 = scmp.eq.s32.totalorder %s21, 0
      %p111 = por %p109, %p110
      %p112 = scmp.le.s32.totalorder 1, %s15
      %p113 = scmp.lt.s32.totalorder %s15, 3
      %p114 = pnand %p112, %p113
      %p115 = pneg %p114
      // Predicated region
      $region9: #{tpu_custom_call.1} parent=5 // pred_check
        _
      $region10: #{tpu_custom_call.1} parent=5 // pred_check_branch
        %117 = sbr.rel (%p114) target = $region12
      $region11: #{tpu_custom_call.1} parent=5 // pred_region
        %s118 = ssub.s32 %s15, 1
        // Predicated region
        $region13: #{tpu_custom_call.1} parent=11 // pred_check
          %p119 = pneg %p48
        $region14: #{tpu_custom_call.1} parent=11 // pred_check_branch
          %121 = sbr.rel (%p119) target = $region16
        $region15: #{tpu_custom_call.1} parent=11 // pred_region
          %s123 = ssub.s32 64, 64
          %124 = vsyncadd [#allocation3], %s123
          %s125 = sshll.u32 [#allocation2], 4
          %s126 = int_to_ptr.vmem [resolvable:$true] %s125
          %131 = dma.hbm_to_vmem [thread:$0]  %s0, 64, %s126, [#allocation3], 32, 32, 2
        $region16: #{tpu_custom_call.1} parent=11 // pred_fallthru
          _
      $region12: #{tpu_custom_call.1} parent=5 // pred_fallthru
        _
      %p132 = scmp.lt.s32.totalorder %s15, 2
      // Predicated region
      $region17: #{tpu_custom_call.1} parent=5 // pred_check
        %p133 = pneg %p132
      $region18: #{tpu_custom_call.1} parent=5 // pred_check_branch
        %135 = sbr.rel (%p133) target = $region20
      $region19: #{tpu_custom_call.1} parent=5 // pred_region
        // Predicated region
        $region21: #{tpu_custom_call.1} parent=19 // pred_check
          %p136 = pneg %p70
        $region22: #{tpu_custom_call.1} parent=19 // pred_check_branch
          %138 = sbr.rel (%p136) target = $region24
        $region23: #{tpu_custom_call.1} parent=19 // pred_region
          #allocation9 [shape = 'u32[6]{0}', space=smem, size = 0x18, scoped, tag = 'DMA stride descriptor']
          %s139 = sand.u32 %s60, 1
          %s140 = scalar_lea.sflag [#allocation6], %s139
          %s141 = sand.u32 %s60, 1
          %s142 = smul.addr %s141, 512
          %s143 = scalar_lea.vmem [#allocation5], %s142
          %s144 = smul.u32 32, %s23
          %s146 = ssub.s32 8192, 8192
          %147 = vsyncadd %s140, %s146
          %s148 = smul.addr %s22, 32
          %s149 = sadd.s32 %s144, %s148
          %s150 = smul.addr %s149, 128
          %s151 = scalar_lea.hbm %s1, %s150
          %s153 = sshll.u32 1, 14
          %s154 = sxor.u32 4294967295, %s153
          %s156 = sld [smem:[#allocation0]]
          %s157 = sadd.s32 2, %s156
          %s159 = sshll.u32 7, 26
          %s160 = sxor.u32 4294967295, %s159
          %s161 = sand.u32 0, %s160
          %s162 = sshll.u32 %s157, 26
          %s163 = sor.u32 %s161, %s162
          %s164 = sshll.u32 %s143, 4
          %s165 = int_to_ptr.vmem [resolvable:$true] %s164
          %171 = sst [smem:[#allocation9]] 8192
          %s172 = scalar_lea.smem [#allocation9], 1
          %173 = sst [smem:[%s172]] 4096
          %s174 = scalar_lea.smem [#allocation9], 2
          %175 = sst [smem:[%s174]] 32
          %s176 = scalar_lea.smem [#allocation9], 3
          %177 = sst [smem:[%s176]] 128
          %s178 = scalar_lea.smem [#allocation9], 4
          %179 = sst [smem:[%s178]] 128
          %s180 = scalar_lea.smem [#allocation9], 5
          %181 = sst [smem:[%s180]] 8
          %183 = dma.general %s151, 8192, %s165, %s140, 131072, [#allocation9], %s163, 0
        $region24: #{tpu_custom_call.1} parent=19 // pred_fallthru
          _
      $region20: #{tpu_custom_call.1} parent=5 // pred_fallthru
        _
      %p184 = scmp.le.s32.totalorder 1, %s15
      %p185 = scmp.lt.s32.totalorder %s15, 3
      %p186 = pnand %p184, %p185
      %p187 = pneg %p186
      // Predicated region
      $region25: #{tpu_custom_call.1} parent=5 // pred_check
        _
      $region26: #{tpu_custom_call.1} parent=5 // pred_check_branch
        %189 = sbr.rel (%p186) target = $region28
      $region27: #{tpu_custom_call.1} parent=5 // pred_region
        %s190 = ssub.s32 %s15, 1
        // Predicated region
        $region29: #{tpu_custom_call.1} parent=27 // pred_check
          %p191 = pneg %p48
        $region30: #{tpu_custom_call.1} parent=27 // pred_check_branch
          %193 = sbr.rel (%p191) target = $region32
        $region31: #{tpu_custom_call.1} parent=27 // pred_region
          %194 = dma.done [#allocation3], 64
        $region32: #{tpu_custom_call.1} parent=27 // pred_fallthru
          _
        %s195 = sand.u32 %s63, 1
        %s196 = scalar_lea.sflag [#allocation6], %s195
        %s197 = sand.u32 %s63, 1
        %s198 = smul.addr %s197, 512
        %s199 = scalar_lea.vmem [#allocation5], %s198
        // Predicated region
        $region33: #{tpu_custom_call.1} parent=27 // pred_check
          %p200 = pneg %p76
        $region34: #{tpu_custom_call.1} parent=27 // pred_check_branch
          %202 = sbr.rel (%p200) target = $region36
        $region35: #{tpu_custom_call.1} parent=27 // pred_region
          %203 = dma.done %s196, 8192
        $region36: #{tpu_custom_call.1} parent=27 // pred_fallthru
          _
        %p204 = pneg %p48
        %p205 = pneg %p45
        %s206 = sand.u32 %s63, 1
        %s207 = scalar_lea.sflag [#allocation6], %s206
        %s208 = sand.u32 %s63, 1
        %s209 = smul.addr %s208, 512
        %s210 = scalar_lea.vmem [#allocation5], %s209
        %p211 = pneg %p76
        %p212 = pneg %p73
        %p213 = pneg %p104
        %p214 = pneg %p101
        %s215 = sand.u32 %s91, 1
        %s216 = scalar_lea.sflag [#allocation4], %s215
        %s217 = sand.u32 %s91, 1
        %s218 = smul.addr %s217, 512
        %s219 = scalar_lea.vmem [#allocation7], %s218
        %s220 = smul.u32 32, %s25
        %s221 = smul.u32 32, %s25
        %v222 = vld [vmem:[#allocation2] sm:$0x3]
        %v223 = vld [vmem:[#allocation2 + $0x2] sm:$0x3]
        %v224 = vld [vmem:[%s199] sm:$0xff]
        %v225 = vld [vmem:[%s199 + $0x8] sm:$0xff]
        %v226 = vld [vmem:[%s199 + $0x10] sm:$0xff]
        %v227 = vld [vmem:[%s199 + $0x18] sm:$0xff]
        %v228 = vld [vmem:[%s199 + $0x20] sm:$0xff]
        %v229 = vld [vmem:[%s199 + $0x28] sm:$0xff]
        %v230 = vld [vmem:[%s199 + $0x30] sm:$0xff]
        %v231 = vld [vmem:[%s199 + $0x38] sm:$0xff]
        %v232 = vld [vmem:[%s199 + $0x40] sm:$0xff]
        %v233 = vld [vmem:[%s199 + $0x48] sm:$0xff]
        %v234 = vld [vmem:[%s199 + $0x50] sm:$0xff]
        %v235 = vld [vmem:[%s199 + $0x58] sm:$0xff]
        %v236 = vld [vmem:[%s199 + $0x60] sm:$0xff]
        %v237 = vld [vmem:[%s199 + $0x68] sm:$0xff]
        %v238 = vld [vmem:[%s199 + $0x70] sm:$0xff]
        %v239 = vld [vmem:[%s199 + $0x78] sm:$0xff]
        %v240 = vld [vmem:[%s199 + $0x80] sm:$0xff]
        %v241 = vld [vmem:[%s199 + $0x88] sm:$0xff]
        %v242 = vld [vmem:[%s199 + $0x90] sm:$0xff]
        %v243 = vld [vmem:[%s199 + $0x98] sm:$0xff]
        %v244 = vld [vmem:[%s199 + $0xa0] sm:$0xff]
        %v245 = vld [vmem:[%s199 + $0xa8] sm:$0xff]
        %v246 = vld [vmem:[%s199 + $0xb0] sm:$0xff]
        %v247 = vld [vmem:[%s199 + $0xb8] sm:$0xff]
        %v248 = vld [vmem:[%s199 + $0xc0] sm:$0xff]
        %v249 = vld [vmem:[%s199 + $0xc8] sm:$0xff]
        %v250 = vld [vmem:[%s199 + $0xd0] sm:$0xff]
        %v251 = vld [vmem:[%s199 + $0xd8] sm:$0xff]
        %v252 = vld [vmem:[%s199 + $0xe0] sm:$0xff]
        %v253 = vld [vmem:[%s199 + $0xe8] sm:$0xff]
        %v254 = vld [vmem:[%s199 + $0xf0] sm:$0xff]
        %v255 = vld [vmem:[%s199 + $0xf8] sm:$0xff]
        %v256 = vlaneseq
        %v257 = vshrl.u32 %v256, 7
        %v258 = vsub.s32 0, %v257
        %v259 = vrot.slane %v222, %v258
        %v260 = vmul.f32 %v224, %v259
        %v261 = vmul.f32 %v225, %v259
        %v262 = vmul.f32 %v226, %v259
        %v263 = vmul.f32 %v227, %v259
        %v264 = vmul.f32 %v228, %v259
        %v265 = vmul.f32 %v229, %v259
        %v266 = vmul.f32 %v230, %v259
        %v267 = vmul.f32 %v231, %v259
        %v268 = vmul.f32 %v232, %v259
        %v269 = vmul.f32 %v233, %v259
        %v270 = vmul.f32 %v234, %v259
        %v271 = vmul.f32 %v235, %v259
        %v272 = vmul.f32 %v236, %v259
        %v273 = vmul.f32 %v237, %v259
        %v274 = vmul.f32 %v238, %v259
        %v275 = vmul.f32 %v239, %v259
        %v276 = vmul.f32 %v240, %v259
        %v277 = vmul.f32 %v241, %v259
        %v278 = vmul.f32 %v242, %v259
        %v279 = vmul.f32 %v243, %v259
        %v280 = vmul.f32 %v244, %v259
        %v281 = vmul.f32 %v245, %v259
        %v282 = vmul.f32 %v246, %v259
        %v283 = vmul.f32 %v247, %v259
        %v284 = vmul.f32 %v248, %v259
        %v285 = vmul.f32 %v249, %v259
        %v286 = vmul.f32 %v250, %v259
        %v287 = vmul.f32 %v251, %v259
        %v288 = vmul.f32 %v252, %v259
        %v289 = vmul.f32 %v253, %v259
        %v290 = vmul.f32 %v254, %v259
        %v291 = vmul.f32 %v255, %v259
        %s292 = scalar_lea.vmem %s199, 256 [#allocation5]
        %v293 = vld [vmem:[%s292] sm:$0xff]
        %v294 = vld [vmem:[%s292 + $0x8] sm:$0xff]
        %v295 = vld [vmem:[%s292 + $0x10] sm:$0xff]
        %v296 = vld [vmem:[%s292 + $0x18] sm:$0xff]
        %v297 = vld [vmem:[%s292 + $0x20] sm:$0xff]
        %v298 = vld [vmem:[%s292 + $0x28] sm:$0xff]
        %v299 = vld [vmem:[%s292 + $0x30] sm:$0xff]
        %v300 = vld [vmem:[%s292 + $0x38] sm:$0xff]
        %v301 = vld [vmem:[%s292 + $0x40] sm:$0xff]
        %v302 = vld [vmem:[%s292 + $0x48] sm:$0xff]
        %v303 = vld [vmem:[%s292 + $0x50] sm:$0xff]
        %v304 = vld [vmem:[%s292 + $0x58] sm:$0xff]
        %v305 = vld [vmem:[%s292 + $0x60] sm:$0xff]
        %v306 = vld [vmem:[%s292 + $0x68] sm:$0xff]
        %v307 = vld [vmem:[%s292 + $0x70] sm:$0xff]
        %v308 = vld [vmem:[%s292 + $0x78] sm:$0xff]
        %v309 = vld [vmem:[%s292 + $0x80] sm:$0xff]
        %v310 = vld [vmem:[%s292 + $0x88] sm:$0xff]
        %v311 = vld [vmem:[%s292 + $0x90] sm:$0xff]
        %v312 = vld [vmem:[%s292 + $0x98] sm:$0xff]
        %v313 = vld [vmem:[%s292 + $0xa0] sm:$0xff]
        %v314 = vld [vmem:[%s292 + $0xa8] sm:$0xff]
        %v315 = vld [vmem:[%s292 + $0xb0] sm:$0xff]
        %v316 = vld [vmem:[%s292 + $0xb8] sm:$0xff]
        %v317 = vld [vmem:[%s292 + $0xc0] sm:$0xff]
        %v318 = vld [vmem:[%s292 + $0xc8] sm:$0xff]
        %v319 = vld [vmem:[%s292 + $0xd0] sm:$0xff]
        %v320 = vld [vmem:[%s292 + $0xd8] sm:$0xff]
        %v321 = vld [vmem:[%s292 + $0xe0] sm:$0xff]
        %v322 = vld [vmem:[%s292 + $0xe8] sm:$0xff]
        %v323 = vld [vmem:[%s292 + $0xf0] sm:$0xff]
        %v324 = vld [vmem:[%s292 + $0xf8] sm:$0xff]
        %v325 = vlaneseq
        %v326 = vshrl.u32 %v325, 7
        %v327 = vsub.s32 1, %v326
        %v328 = vrot.slane %v222, %v327
        %v329 = vmul.f32 %v293, %v328
        %v330 = vmul.f32 %v294, %v328
        %v331 = vmul.f32 %v295, %v328
        %v332 = vmul.f32 %v296, %v328
        %v333 = vmul.f32 %v297, %v328
        %v334 = vmul.f32 %v298, %v328
        %v335 = vmul.f32 %v299, %v328
        %v336 = vmul.f32 %v300, %v328
        %v337 = vmul.f32 %v301, %v328
        %v338 = vmul.f32 %v302, %v328
        %v339 = vmul.f32 %v303, %v328
        %v340 = vmul.f32 %v304, %v328
        %v341 = vmul.f32 %v305, %v328
        %v342 = vmul.f32 %v306, %v328
        %v343 = vmul.f32 %v307, %v328
        %v344 = vmul.f32 %v308, %v328
        %v345 = vmul.f32 %v309, %v328
        %v346 = vmul.f32 %v310, %v328
        %v347 = vmul.f32 %v311, %v328
        %v348 = vmul.f32 %v312, %v328
        %v349 = vmul.f32 %v313, %v328
        %v350 = vmul.f32 %v314, %v328
        %v351 = vmul.f32 %v315, %v328
        %v352 = vmul.f32 %v316, %v328
        %v353 = vmul.f32 %v317, %v328
        %v354 = vmul.f32 %v318, %v328
        %v355 = vmul.f32 %v319, %v328
        %v356 = vmul.f32 %v320, %v328
        %v357 = vmul.f32 %v321, %v328
        %v358 = vmul.f32 %v322, %v328
        %v359 = vmul.f32 %v323, %v328
        %v360 = vmul.f32 %v324, %v328
        %v361 = vadd.f32 %v260, %v329
        %v362 = vadd.f32 %v261, %v330
        %v363 = vadd.f32 %v262, %v331
        %v364 = vadd.f32 %v263, %v332
        %v365 = vadd.f32 %v264, %v333
        %v366 = vadd.f32 %v265, %v334
        %v367 = vadd.f32 %v266, %v335
        %v368 = vadd.f32 %v267, %v336
        %v369 = vadd.f32 %v268, %v337
        %v370 = vadd.f32 %v269, %v338
        %v371 = vadd.f32 %v270, %v339
        %v372 = vadd.f32 %v271, %v340
        %v373 = vadd.f32 %v272, %v341
        %v374 = vadd.f32 %v273, %v342
        %v375 = vadd.f32 %v274, %v343
        %v376 = vadd.f32 %v275, %v344
        %v377 = vadd.f32 %v276, %v345
        %v378 = vadd.f32 %v277, %v346
        %v379 = vadd.f32 %v278, %v347
        %v380 = vadd.f32 %v279, %v348
        %v381 = vadd.f32 %v280, %v349
        %v382 = vadd.f32 %v281, %v350
        %v383 = vadd.f32 %v282, %v351
        %v384 = vadd.f32 %v283, %v352
        %v385 = vadd.f32 %v284, %v353
        %v386 = vadd.f32 %v285, %v354
        %v387 = vadd.f32 %v286, %v355
        %v388 = vadd.f32 %v287, %v356
        %v389 = vadd.f32 %v288, %v357
        %v390 = vadd.f32 %v289, %v358
        %v391 = vadd.f32 %v290, %v359
        %v392 = vadd.f32 %v291, %v360
        %393 = vst [vmem:[%s219] sm:$0xff] %v361
        %394 = vst [vmem:[%s219 + $0x8] sm:$0xff] %v362
        %395 = vst [vmem:[%s219 + $0x10] sm:$0xff] %v363
        %396 = vst [vmem:[%s219 + $0x18] sm:$0xff] %v364
        %397 = vst [vmem:[%s219 + $0x20] sm:$0xff] %v365
        %398 = vst [vmem:[%s219 + $0x28] sm:$0xff] %v366
        %399 = vst [vmem:[%s219 + $0x30] sm:$0xff] %v367
        %400 = vst [vmem:[%s219 + $0x38] sm:$0xff] %v368
        %401 = vst [vmem:[%s219 + $0x40] sm:$0xff] %v369
        %402 = vst [vmem:[%s219 + $0x48] sm:$0xff] %v370
        %403 = vst [vmem:[%s219 + $0x50] sm:$0xff] %v371
        %404 = vst [vmem:[%s219 + $0x58] sm:$0xff] %v372
        %405 = vst [vmem:[%s219 + $0x60] sm:$0xff] %v373
        %406 = vst [vmem:[%s219 + $0x68] sm:$0xff] %v374
        %407 = vst [vmem:[%s219 + $0x70] sm:$0xff] %v375
        %408 = vst [vmem:[%s219 + $0x78] sm:$0xff] %v376
        %409 = vst [vmem:[%s219 + $0x80] sm:$0xff] %v377
        %410 = vst [vmem:[%s219 + $0x88] sm:$0xff] %v378
        %411 = vst [vmem:[%s219 + $0x90] sm:$0xff] %v379
        %412 = vst [vmem:[%s219 + $0x98] sm:$0xff] %v380
        %413 = vst [vmem:[%s219 + $0xa0] sm:$0xff] %v381
        %414 = vst [vmem:[%s219 + $0xa8] sm:$0xff] %v382
        %415 = vst [vmem:[%s219 + $0xb0] sm:$0xff] %v383
        %416 = vst [vmem:[%s219 + $0xb8] sm:$0xff] %v384
        %417 = vst [vmem:[%s219 + $0xc0] sm:$0xff] %v385
        %418 = vst [vmem:[%s219 + $0xc8] sm:$0xff] %v386
        %419 = vst [vmem:[%s219 + $0xd0] sm:$0xff] %v387
        %420 = vst [vmem:[%s219 + $0xd8] sm:$0xff] %v388
        %421 = vst [vmem:[%s219 + $0xe0] sm:$0xff] %v389
        %422 = vst [vmem:[%s219 + $0xe8] sm:$0xff] %v390
        %423 = vst [vmem:[%s219 + $0xf0] sm:$0xff] %v391
        %424 = vst [vmem:[%s219 + $0xf8] sm:$0xff] %v392
        %v425 = vld [vmem:[%s199] sm:$0xff]
        %v426 = vld [vmem:[%s199 + $0x8] sm:$0xff]
        %v427 = vld [vmem:[%s199 + $0x10] sm:$0xff]
        %v428 = vld [vmem:[%s199 + $0x18] sm:$0xff]
        %v429 = vld [vmem:[%s199 + $0x20] sm:$0xff]
        %v430 = vld [vmem:[%s199 + $0x28] sm:$0xff]
        %v431 = vld [vmem:[%s199 + $0x30] sm:$0xff]
        %v432 = vld [vmem:[%s199 + $0x38] sm:$0xff]
        %v433 = vld [vmem:[%s199 + $0x40] sm:$0xff]
        %v434 = vld [vmem:[%s199 + $0x48] sm:$0xff]
        %v435 = vld [vmem:[%s199 + $0x50] sm:$0xff]
        %v436 = vld [vmem:[%s199 + $0x58] sm:$0xff]
        %v437 = vld [vmem:[%s199 + $0x60] sm:$0xff]
        %v438 = vld [vmem:[%s199 + $0x68] sm:$0xff]
        %v439 = vld [vmem:[%s199 + $0x70] sm:$0xff]
        %v440 = vld [vmem:[%s199 + $0x78] sm:$0xff]
        %v441 = vld [vmem:[%s199 + $0x80] sm:$0xff]
        %v442 = vld [vmem:[%s199 + $0x88] sm:$0xff]
        %v443 = vld [vmem:[%s199 + $0x90] sm:$0xff]
        %v444 = vld [vmem:[%s199 + $0x98] sm:$0xff]
        %v445 = vld [vmem:[%s199 + $0xa0] sm:$0xff]
        %v446 = vld [vmem:[%s199 + $0xa8] sm:$0xff]
        %v447 = vld [vmem:[%s199 + $0xb0] sm:$0xff]
        %v448 = vld [vmem:[%s199 + $0xb8] sm:$0xff]
        %v449 = vld [vmem:[%s199 + $0xc0] sm:$0xff]
        %v450 = vld [vmem:[%s199 + $0xc8] sm:$0xff]
        %v451 = vld [vmem:[%s199 + $0xd0] sm:$0xff]
        %v452 = vld [vmem:[%s199 + $0xd8] sm:$0xff]
        %v453 = vld [vmem:[%s199 + $0xe0] sm:$0xff]
        %v454 = vld [vmem:[%s199 + $0xe8] sm:$0xff]
        %v455 = vld [vmem:[%s199 + $0xf0] sm:$0xff]
        %v456 = vld [vmem:[%s199 + $0xf8] sm:$0xff]
        %v457 = vlaneseq
        %v458 = vshrl.u32 %v457, 7
        %v459 = vsub.s32 0, %v458
        %v460 = vrot.slane %v223, %v459
        %v461 = vmul.f32 %v425, %v460
        %v462 = vmul.f32 %v426, %v460
        %v463 = vmul.f32 %v427, %v460
        %v464 = vmul.f32 %v428, %v460
        %v465 = vmul.f32 %v429, %v460
        %v466 = vmul.f32 %v430, %v460
        %v467 = vmul.f32 %v431, %v460
        %v468 = vmul.f32 %v432, %v460
        %v469 = vmul.f32 %v433, %v460
        %v470 = vmul.f32 %v434, %v460
        %v471 = vmul.f32 %v435, %v460
        %v472 = vmul.f32 %v436, %v460
        %v473 = vmul.f32 %v437, %v460
        %v474 = vmul.f32 %v438, %v460
        %v475 = vmul.f32 %v439, %v460
        %v476 = vmul.f32 %v440, %v460
        %v477 = vmul.f32 %v441, %v460
        %v478 = vmul.f32 %v442, %v460
        %v479 = vmul.f32 %v443, %v460
        %v480 = vmul.f32 %v444, %v460
        %v481 = vmul.f32 %v445, %v460
        %v482 = vmul.f32 %v446, %v460
        %v483 = vmul.f32 %v447, %v460
        %v484 = vmul.f32 %v448, %v460
        %v485 = vmul.f32 %v449, %v460
        %v486 = vmul.f32 %v450, %v460
        %v487 = vmul.f32 %v451, %v460
        %v488 = vmul.f32 %v452, %v460
        %v489 = vmul.f32 %v453, %v460
        %v490 = vmul.f32 %v454, %v460
        %v491 = vmul.f32 %v455, %v460
        %v492 = vmul.f32 %v456, %v460
        %v493 = vld [vmem:[%s292] sm:$0xff]
        %v494 = vld [vmem:[%s292 + $0x8] sm:$0xff]
        %v495 = vld [vmem:[%s292 + $0x10] sm:$0xff]
        %v496 = vld [vmem:[%s292 + $0x18] sm:$0xff]
        %v497 = vld [vmem:[%s292 + $0x20] sm:$0xff]
        %v498 = vld [vmem:[%s292 + $0x28] sm:$0xff]
        %v499 = vld [vmem:[%s292 + $0x30] sm:$0xff]
        %v500 = vld [vmem:[%s292 + $0x38] sm:$0xff]
        %v501 = vld [vmem:[%s292 + $0x40] sm:$0xff]
        %v502 = vld [vmem:[%s292 + $0x48] sm:$0xff]
        %v503 = vld [vmem:[%s292 + $0x50] sm:$0xff]
        %v504 = vld [vmem:[%s292 + $0x58] sm:$0xff]
        %v505 = vld [vmem:[%s292 + $0x60] sm:$0xff]
        %v506 = vld [vmem:[%s292 + $0x68] sm:$0xff]
        %v507 = vld [vmem:[%s292 + $0x70] sm:$0xff]
        %v508 = vld [vmem:[%s292 + $0x78] sm:$0xff]
        %v509 = vld [vmem:[%s292 + $0x80] sm:$0xff]
        %v510 = vld [vmem:[%s292 + $0x88] sm:$0xff]
        %v511 = vld [vmem:[%s292 + $0x90] sm:$0xff]
        %v512 = vld [vmem:[%s292 + $0x98] sm:$0xff]
        %v513 = vld [vmem:[%s292 + $0xa0] sm:$0xff]
        %v514 = vld [vmem:[%s292 + $0xa8] sm:$0xff]
        %v515 = vld [vmem:[%s292 + $0xb0] sm:$0xff]
        %v516 = vld [vmem:[%s292 + $0xb8] sm:$0xff]
        %v517 = vld [vmem:[%s292 + $0xc0] sm:$0xff]
        %v518 = vld [vmem:[%s292 + $0xc8] sm:$0xff]
        %v519 = vld [vmem:[%s292 + $0xd0] sm:$0xff]
        %v520 = vld [vmem:[%s292 + $0xd8] sm:$0xff]
        %v521 = vld [vmem:[%s292 + $0xe0] sm:$0xff]
        %v522 = vld [vmem:[%s292 + $0xe8] sm:$0xff]
        %v523 = vld [vmem:[%s292 + $0xf0] sm:$0xff]
        %v524 = vld [vmem:[%s292 + $0xf8] sm:$0xff]
        %v525 = vlaneseq
        %v526 = vshrl.u32 %v525, 7
        %v527 = vsub.s32 1, %v526
        %v528 = vrot.slane %v223, %v527
        %v529 = vmul.f32 %v493, %v528
        %v530 = vmul.f32 %v494, %v528
        %v531 = vmul.f32 %v495, %v528
        %v532 = vmul.f32 %v496, %v528
        %v533 = vmul.f32 %v497, %v528
        %v534 = vmul.f32 %v498, %v528
        %v535 = vmul.f32 %v499, %v528
        %v536 = vmul.f32 %v500, %v528
        %v537 = vmul.f32 %v501, %v528
        %v538 = vmul.f32 %v502, %v528
        %v539 = vmul.f32 %v503, %v528
        %v540 = vmul.f32 %v504, %v528
        %v541 = vmul.f32 %v505, %v528
        %v542 = vmul.f32 %v506, %v528
        %v543 = vmul.f32 %v507, %v528
        %v544 = vmul.f32 %v508, %v528
        %v545 = vmul.f32 %v509, %v528
        %v546 = vmul.f32 %v510, %v528
        %v547 = vmul.f32 %v511, %v528
        %v548 = vmul.f32 %v512, %v528
        %v549 = vmul.f32 %v513, %v528
        %v550 = vmul.f32 %v514, %v528
        %v551 = vmul.f32 %v515, %v528
        %v552 = vmul.f32 %v516, %v528
        %v553 = vmul.f32 %v517, %v528
        %v554 = vmul.f32 %v518, %v528
        %v555 = vmul.f32 %v519, %v528
        %v556 = vmul.f32 %v520, %v528
        %v557 = vmul.f32 %v521, %v528
        %v558 = vmul.f32 %v522, %v528
        %v559 = vmul.f32 %v523, %v528
        %v560 = vmul.f32 %v524, %v528
        %v561 = vadd.f32 %v461, %v529
        %v562 = vadd.f32 %v462, %v530
        %v563 = vadd.f32 %v463, %v531
        %v564 = vadd.f32 %v464, %v532
        %v565 = vadd.f32 %v465, %v533
        %v566 = vadd.f32 %v466, %v534
        %v567 = vadd.f32 %v467, %v535
        %v568 = vadd.f32 %v468, %v536
        %v569 = vadd.f32 %v469, %v537
        %v570 = vadd.f32 %v470, %v538
        %v571 = vadd.f32 %v471, %v539
        %v572 = vadd.f32 %v472, %v540
        %v573 = vadd.f32 %v473, %v541
        %v574 = vadd.f32 %v474, %v542
        %v575 = vadd.f32 %v475, %v543
        %v576 = vadd.f32 %v476, %v544
        %v577 = vadd.f32 %v477, %v545
        %v578 = vadd.f32 %v478, %v546
        %v579 = vadd.f32 %v479, %v547
        %v580 = vadd.f32 %v480, %v548
        %v581 = vadd.f32 %v481, %v549
        %v582 = vadd.f32 %v482, %v550
        %v583 = vadd.f32 %v483, %v551
        %v584 = vadd.f32 %v484, %v552
        %v585 = vadd.f32 %v485, %v553
        %v586 = vadd.f32 %v486, %v554
        %v587 = vadd.f32 %v487, %v555
        %v588 = vadd.f32 %v488, %v556
        %v589 = vadd.f32 %v489, %v557
        %v590 = vadd.f32 %v490, %v558
        %v591 = vadd.f32 %v491, %v559
        %v592 = vadd.f32 %v492, %v560
        %s593 = scalar_lea.vmem %s219, 256 [#allocation7]
        %594 = vst [vmem:[%s593] sm:$0xff] %v561
        %595 = vst [vmem:[%s593 + $0x8] sm:$0xff] %v562
        %596 = vst [vmem:[%s593 + $0x10] sm:$0xff] %v563
        %597 = vst [vmem:[%s593 + $0x18] sm:$0xff] %v564
        %598 = vst [vmem:[%s593 + $0x20] sm:$0xff] %v565
        %599 = vst [vmem:[%s593 + $0x28] sm:$0xff] %v566
        %600 = vst [vmem:[%s593 + $0x30] sm:$0xff] %v567
        %601 = vst [vmem:[%s593 + $0x38] sm:$0xff] %v568
        %602 = vst [vmem:[%s593 + $0x40] sm:$0xff] %v569
        %603 = vst [vmem:[%s593 + $0x48] sm:$0xff] %v570
        %604 = vst [vmem:[%s593 + $0x50] sm:$0xff] %v571
        %605 = vst [vmem:[%s593 + $0x58] sm:$0xff] %v572
        %606 = vst [vmem:[%s593 + $0x60] sm:$0xff] %v573
        %607 = vst [vmem:[%s593 + $0x68] sm:$0xff] %v574
        %608 = vst [vmem:[%s593 + $0x70] sm:$0xff] %v575
        %609 = vst [vmem:[%s593 + $0x78] sm:$0xff] %v576
        %610 = vst [vmem:[%s593 + $0x80] sm:$0xff] %v577
        %611 = vst [vmem:[%s593 + $0x88] sm:$0xff] %v578
        %612 = vst [vmem:[%s593 + $0x90] sm:$0xff] %v579
        %613 = vst [vmem:[%s593 + $0x98] sm:$0xff] %v580
        %614 = vst [vmem:[%s593 + $0xa0] sm:$0xff] %v581
        %615 = vst [vmem:[%s593 + $0xa8] sm:$0xff] %v582
        %616 = vst [vmem:[%s593 + $0xb0] sm:$0xff] %v583
        %617 = vst [vmem:[%s593 + $0xb8] sm:$0xff] %v584
        %618 = vst [vmem:[%s593 + $0xc0] sm:$0xff] %v585
        %619 = vst [vmem:[%s593 + $0xc8] sm:$0xff] %v586
        %620 = vst [vmem:[%s593 + $0xd0] sm:$0xff] %v587
        %621 = vst [vmem:[%s593 + $0xd8] sm:$0xff] %v588
        %622 = vst [vmem:[%s593 + $0xe0] sm:$0xff] %v589
        %623 = vst [vmem:[%s593 + $0xe8] sm:$0xff] %v590
        %624 = vst [vmem:[%s593 + $0xf0] sm:$0xff] %v591
        %625 = vst [vmem:[%s593 + $0xf8] sm:$0xff] %v592
        %s626 = sand.u32 %s91, 1
        %s627 = scalar_lea.sflag [#allocation4], %s626
        %s628 = sand.u32 %s91, 1
        %s629 = smul.addr %s628, 512
        %s630 = scalar_lea.vmem [#allocation7], %s629
        // Predicated region
        $region37: #{tpu_custom_call.1} parent=27 // pred_check
          %p631 = pneg %p101
        $region38: #{tpu_custom_call.1} parent=27 // pred_check_branch
          %633 = sbr.rel (%p631) target = $region40
        $region39: #{tpu_custom_call.1} parent=27 // pred_region
          #allocation11 [shape = 'u32[6]{0}', space=smem, size = 0x18, scoped, tag = 'DMA stride descriptor']
          %s634 = smul.u32 32, %s25
          %s636 = ssub.s32 8192, 8192
          %637 = vsyncadd %s627, %s636
          %s638 = smul.addr %s24, 32
          %s639 = sadd.s32 %s634, %s638
          %s640 = smul.addr %s639, 128
          %s641 = scalar_lea.hbm %s2, %s640
          %s643 = sshll.u32 1, 14
          %s644 = sxor.u32 4294967295, %s643
          %s647 = sshll.u32 7, 18
          %s648 = sxor.u32 4294967295, %s647
          %s649 = sand.u32 0, %s648
          %s651 = sor.u32 %s649, 0
          %s652 = sshll.u32 %s630, 4
          %s653 = int_to_ptr.vmem [resolvable:$true] %s652
          %659 = sst [smem:[#allocation11]] 4096
          %s660 = scalar_lea.smem [#allocation11], 1
          %661 = sst [smem:[%s660]] 8192
          %s662 = scalar_lea.smem [#allocation11], 2
          %663 = sst [smem:[%s662]] 32
          %s664 = scalar_lea.smem [#allocation11], 3
          %665 = sst [smem:[%s664]] 128
          %s666 = scalar_lea.smem [#allocation11], 4
          %667 = sst [smem:[%s666]] 128
          %s668 = scalar_lea.smem [#allocation11], 5
          %669 = sst [smem:[%s668]] 8
          %671 = dma.general %s653, 8192, %s641, %s627, 131072, [#allocation11], %s651, 0
        $region40: #{tpu_custom_call.1} parent=27 // pred_fallthru
          _
      $region28: #{tpu_custom_call.1} parent=5 // pred_fallthru
        _
      %p672 = scmp.le.s32.totalorder 2, %s15
      // Predicated region
      $region41: #{tpu_custom_call.1} parent=5 // pred_check
        %p673 = pneg %p672
      $region42: #{tpu_custom_call.1} parent=5 // pred_check_branch
        %675 = sbr.rel (%p673) target = $region44
      $region43: #{tpu_custom_call.1} parent=5 // pred_region
        %s676 = ssub.s32 %s15, 2
        // Predicated region
        $region45: #{tpu_custom_call.1} parent=43 // pred_check
          %p677 = pneg %p107
        $region46: #{tpu_custom_call.1} parent=43 // pred_check_branch
          %679 = sbr.rel (%p677) target = $region48
        $region47: #{tpu_custom_call.1} parent=43 // pred_region
          %s680 = sand.u32 %s92, 1
          %s681 = scalar_lea.sflag [#allocation4], %s680
          %s682 = sand.u32 %s92, 1
          %s683 = smul.addr %s682, 512
          %s684 = scalar_lea.vmem [#allocation7], %s683
          %685 = dma.done %s681, 8192
        $region48: #{tpu_custom_call.1} parent=43 // pred_fallthru
          _
      $region44: #{tpu_custom_call.1} parent=5 // pred_fallthru
        _
    $region6: #{tpu_custom_call.1} parent=1 // loop_footer
      %s19 = sadd.s32 1, %s15
    $region7: #{tpu_custom_call.1} parent=1 // loop_footer_branch
      %14 = sbr.rel target = $region3
    $region8: #{tpu_custom_call.1} parent=1 // loop_exit
      _
    %686 = vsyncpa [#allocation3], 1
    %s687 = scalar_lea.sflag [#allocation3], 1
    %688 = vsyncpa %s687, 1
    %689 = vsyncpa [#allocation6], 1
    %s690 = scalar_lea.sflag [#allocation6], 1
    %691 = vsyncpa %s690, 1
    %692 = vsyncpa [#allocation4], 1
    %s693 = scalar_lea.sflag [#allocation4], 1
    %694 = vsyncpa %s693, 1

</llo_original>
